<compile_context>
chip_gen: v6e
topology: v6e:2x2x1
jax: 0.10.0
libtpu: 0.0.40
codegen_flags: <defaults>
</compile_context>

<pallas_src>
import functools
import math

import jax
import jax.numpy as jnp
from jax.experimental import pallas as pl
from jax.experimental.pallas import tpu as pltpu


# ----------------------------- kernels ------------------------------------- #

def _rmsnorm_kernel(x_ref, w_ref, o_ref):
    """Plain path: one block row == one logical row (H is lane-friendly)."""
    x = x_ref[...].astype(jnp.float32)                       # (tile, H)
    ss = jnp.sum(x * x, axis=-1, keepdims=True)              # (tile, 1)
    inv = jax.lax.rsqrt(ss * (1.0 / x.shape[-1]))            # no eps: matches torch ref
    w = w_ref[...].astype(jnp.float32)                       # (1, H) sublane broadcast
    o_ref[...] = (x * inv * w).astype(o_ref.dtype)


def _rmsnorm_folded_kernel(x_ref, seg_ref, segw_ref, o_ref, *, hidden: int):
    """Lane-dense path: each block row holds `group` logical rows of width H.

    seg  : (group*H, group) one-hot column-segment matrix  -> per-row sums
    segw : (group, group*H) segment matrix pre-scaled by the weight
    """
    x = x_ref[...].astype(jnp.float32)                       # (tile, group*H)
    ss = jnp.dot(x * x, seg_ref[...],
                 preferred_element_type=jnp.float32)         # (tile, group)
    inv = jax.lax.rsqrt(ss * (1.0 / hidden))                 # (tile, group)
    scale = jnp.dot(inv, segw_ref[...],
                    preferred_element_type=jnp.float32)      # (tile, group*H)
    o_ref[...] = (x * scale).astype(o_ref.dtype)


# ----------------------------- sizing helpers ------------------------------ #

def _vmem_limit_bytes() -> int:
    """Generation-aware VMEM limit: 64 MiB on v5e/v6e (128 MiB phys), ~48 MiB on v7x."""
    cap = 64 * 1024 * 1024  # conservative fallback (safe on every known gen)
    try:
        info = pltpu.get_tpu_info()
        cap = int(getattr(info, "vmem_capacity_bytes", cap))
    except Exception:
        pass
    return int(min(64 * 1024 * 1024, (cap * 3) // 4))


def _choose_tile_rows(total_rows: int, width: int, in_bytes: int,
                      sublane: int, budget_bytes: int) -> int:
    # Per block row: 2x in + 2x out pipeline buffers (input dtype) plus roughly
    # two full-width f32 temporaries from the in-kernel f32 math.
    per_row_bytes = width * (4 * in_bytes + 8)
    max_rows = max(sublane, budget_bytes // per_row_bytes)
    tile = min(total_rows, max_rows)
    if tile < total_rows:
        # block is not the full row extent -> keep sublane-packing alignment
        tile = max(sublane, (tile // sublane) * sublane)
    elif total_rows > sublane:
        # A 1-step grid leaves one TensorCore idle on v7x; split into >=2 steps.
        half = (total_rows + 1) // 2
        tile = min(total_rows, ((half + sublane - 1) // sublane) * sublane)
    return int(tile)


# ----------------------------- wrapper -------------------------------------- #

def rmsnorm(x: jax.Array, scaler: jax.Array) -> jax.Array:
    """x: (B, S, H), scaler: (H,) -> (B, S, H).  Normalize over the last axis (torch dim=2)."""
    B, S, H = x.shape
    total_rows = B * S
    in_bytes = jnp.dtype(x.dtype).itemsize
    sublane = 8 * max(1, 4 // in_bytes)          # f32 -> 8, bf16 -> 16, int8/fp8 -> 32

    # Lane-densify narrow hidden sizes: fold `group` logical rows into one
    # 128-lane-aligned block row (contiguity-preserving, so the wrapper reshape is free).
    group = 1
    if H % 128 != 0:
        fold = math.lcm(H, 128) // H
        if 1 < fold <= 16 and total_rows % fold == 0:
            group = fold
    width = group * H
    rows = total_rows // group

    vmem_limit = _vmem_limit_bytes()
    budget = (vmem_limit * 7) // 10
    if group > 1:
        budget -= 2 * width * group * 4          # grid-invariant segment matrices
    budget = max(budget, 4 * 1024 * 1024)

    tile_rows = _choose_tile_rows(rows, width, in_bytes, sublane, budget)
    grid = (pl.cdiv(rows, tile_rows),)

    x2d = x.reshape(rows, width)
    row_spec = pl.BlockSpec((tile_rows, width), lambda i: (i, 0))
    compiler_params = pltpu.CompilerParams(
        dimension_semantics=("parallel",),
        vmem_limit_bytes=vmem_limit,
    )

    if group == 1:
        out2d = pl.pallas_call(
            _rmsnorm_kernel,
            out_shape=jax.ShapeDtypeStruct((rows, width), x.dtype),
            grid=grid,
            in_specs=[
                row_spec,
                pl.BlockSpec((1, H), lambda i: (0, 0)),          # grid-invariant weight
            ],
            out_specs=row_spec,
            compiler_params=compiler_params,
        )(x2d, scaler.reshape(1, H))
    else:
        # seg[c, j]  = 1 iff column c belongs to logical row j within the fold
        # segw[j, c] = scaler[c % H] iff column c belongs to logical row j, else 0
        col = jnp.arange(width, dtype=jnp.int32) // H
        seg = (col[:, None] == jnp.arange(group, dtype=jnp.int32)[None, :]).astype(jnp.float32)
        segw = seg.T * jnp.tile(scaler.astype(jnp.float32), group)[None, :]
        out2d = pl.pallas_call(
            functools.partial(_rmsnorm_folded_kernel, hidden=H),
            out_shape=jax.ShapeDtypeStruct((rows, width), x.dtype),
            grid=grid,
            in_specs=[
                row_spec,
                pl.BlockSpec((width, group), lambda i: (0, 0)),   # grid-invariant
                pl.BlockSpec((group, width), lambda i: (0, 0)),   # grid-invariant
            ],
            out_specs=row_spec,
            compiler_params=compiler_params,
        )(x2d, seg, segw)

    return out2d.reshape(B, S, H)


# ----------------------------- reference & demo ----------------------------- #

def rmsnorm_ref(x, scaler):
    squared_sum = jnp.sum(jnp.square(x), axis=2, keepdims=True)
    mean = squared_sum / x.shape[2]
    root = jnp.sqrt(mean)
    return (x / root) * scaler


if __name__ == "__main__":
    key = jax.random.PRNGKey(0)
    B, S, H = 2, 8, 32
    x = jax.random.normal(key, (B, S, H), dtype=jnp.float32)
    # deterministic parameter init: ones, matching nn.Parameter(torch.ones(size))
    scaler = jnp.ones((H,), dtype=jnp.float32)

    out = rmsnorm(x, scaler)
    jax.block_until_ready(out)

    ref = rmsnorm_ref(x, scaler)
    assert out.shape == (B, S, H)
    assert jnp.allclose(out, ref, atol=1e-5, rtol=1e-5)
    print("KERNEL_OK")
</pallas_src>

<mosaic_0001>
module attributes {stable_mosaic.version = 11 : i64} {
  func.func @_rmsnorm_folded_kernel(%arg0: i32, %arg1: memref<4x128xf32, #tpu.memory_space<vmem>>, %arg2: memref<128x4xf32, #tpu.memory_space<vmem>>, %arg3: memref<4x128xf32, #tpu.memory_space<vmem>>, %arg4: memref<4x128xf32, #tpu.memory_space<vmem>>) attributes {dimension_semantics = [#tpu.dimension_semantics<parallel>], iteration_bounds = array<i64: 1>, scalar_prefetch = 0 : i64, scratch_operands = 0 : i64, tpu.core_type = #tpu.core_type<tc>, window_params = [{transform_indices = @transform_0, window_bounds = array<i64: 4, 128>}, {pipeline_mode = #tpu.pipeline_mode<synchronous>, transform_indices = @transform_1, window_bounds = array<i64: 128, 4>}, {pipeline_mode = #tpu.pipeline_mode<synchronous>, transform_indices = @transform_2, window_bounds = array<i64: 4, 128>}, {transform_indices = @transform_3, window_bounds = array<i64: 4, 128>}]} {
    %c0 = arith.constant 0 : index
    %c0_0 = arith.constant 0 : index
    %0 = vector.load %arg1[%c0, %c0_0] : memref<4x128xf32, #tpu.memory_space<vmem>>, vector<4x128xf32>
    %1 = arith.mulf %0, %0 : vector<4x128xf32>
    %c0_1 = arith.constant 0 : index
    %c0_2 = arith.constant 0 : index
    %2 = vector.load %arg2[%c0_1, %c0_2] : memref<128x4xf32, #tpu.memory_space<vmem>>, vector<128x4xf32>
    %cst = arith.constant dense<0.000000e+00> : vector<4x4xf32>
    %3 = tpu.matmul %1, %2, %cst {dimension_numbers = #tpu.dot_dimension_numbers<[1], [0], [0], [1], [0, 0, 1, 1], [], []>} : vector<4x128xf32>, vector<128x4xf32>, vector<4x4xf32> -> vector<4x4xf32>
    %cst_3 = arith.constant 3.125000e-02 : f32
    %4 = vector.broadcast %cst_3 : f32 to vector<4x4xf32>
    %5 = arith.mulf %3, %4 : vector<4x4xf32>
    %6 = math.rsqrt %5 : vector<4x4xf32>
    %c0_4 = arith.constant 0 : index
    %c0_5 = arith.constant 0 : index
    %7 = vector.load %arg3[%c0_4, %c0_5] : memref<4x128xf32, #tpu.memory_space<vmem>>, vector<4x128xf32>
    %cst_6 = arith.constant dense<0.000000e+00> : vector<4x128xf32>
    %8 = tpu.matmul %6, %7, %cst_6 {dimension_numbers = #tpu.dot_dimension_numbers<[1], [0], [0], [1], [0, 0, 1, 1], [], []>} : vector<4x4xf32>, vector<4x128xf32>, vector<4x128xf32> -> vector<4x128xf32>
    %9 = arith.mulf %0, %8 : vector<4x128xf32>
    %c0_7 = arith.constant 0 : index
    %c0_8 = arith.constant 0 : index
    %10 = vector.load %arg4[%c0_7, %c0_8] : memref<4x128xf32, #tpu.memory_space<vmem>>, vector<4x128xf32>
    tpu.vector_store %arg4[%c0_7, %c0_8], %9 {strides = array<i32>} : memref<4x128xf32, #tpu.memory_space<vmem>>, vector<4x128xf32>,
    return
  }
  func.func @transform_0(%arg0: i32) -> (i32, i32) {
    %c0_i32 = arith.constant 0 : i32
    %c0_i32_0 = arith.constant 0 : i32
    return %arg0, %c0_i32 : i32, i32
  }
  func.func @transform_1(%arg0: i32) -> (i32, i32) {
    %c0_i32 = arith.constant 0 : i32
    %c0_i32_0 = arith.constant 0 : i32
    %c0_i32_1 = arith.constant 0 : i32
    return %c0_i32, %c0_i32_0 : i32, i32
  }
  func.func @transform_2(%arg0: i32) -> (i32, i32) {
    %c0_i32 = arith.constant 0 : i32
    %c0_i32_0 = arith.constant 0 : i32
    %c0_i32_1 = arith.constant 0 : i32
    return %c0_i32, %c0_i32_0 : i32, i32
  }
  func.func @transform_3(%arg0: i32) -> (i32, i32) {
    %c0_i32 = arith.constant 0 : i32
    %c0_i32_0 = arith.constant 0 : i32
    return %arg0, %c0_i32 : i32, i32
  }
}

</mosaic_0001>

<llo_original>
// kernel: tpu_custom_call.1
$region0: #{tpu_custom_call.1}
  #allocation0 [shape = 'u32[]', space=smem, size = 0x4, offset = 0x4, fixed_abs, tag = 'smem constant byte address 0x4 - core index']
  #allocation1 [shape = 'u32[144,128]{1,0:T(1,128)}', space=vmem, size = 0x12000, scoped, tag = 'internal scratch']
  %s0 = inlined_call_operand.vmem [shape: f32[4,128], index: 0, kind: input, shape index: {}]
  %s1 = inlined_call_operand.vmem [shape: f32[128,4], index: 1, kind: input, shape index: {}]
  %s2 = inlined_call_operand.vmem [shape: f32[4,128], index: 2, kind: input, shape index: {}]
  %s3 = inlined_call_operand.hbm [shape: f32[4,128], index: 3, kind: output, shape index: {}]
  %s4 = sld [smem:[#allocation0]]
  $region22: #{tpu_custom_call.1} parent=0
    _
  %s6 = ssub.s32 1, %s4
  %s7 = scalar_select 0, %s6, %s4
  $region1: #{tpu_custom_call.1} parent=0
    #allocation2 [shape = 'u8[2048]{0}', space=vmem, size = 0x800, scoped, tag = 'output window, operand 0, single buffered']
    #allocation3 [shape = 's32[1]{0}', space=sflag, size = 0x4, scoped, tag = 'scoped memory for tpu_custom_call.1']
    %8 = vsyncpa [#allocation3], 0
    // Predicated region
    $region2: #{tpu_custom_call.1} parent=1 // pred_check
      _
    $region3: #{tpu_custom_call.1} parent=1 // pred_check_branch
      %10 = sbr.rel (0) target = $region5
    $region4: #{tpu_custom_call.1} parent=1 // pred_region
      _
    $region5: #{tpu_custom_call.1} parent=1 // pred_fallthru
      _
    // Predicated region
    $region6: #{tpu_custom_call.1} parent=1 // pred_check
      _
    $region7: #{tpu_custom_call.1} parent=1 // pred_check_branch
      %12 = sbr.rel (0) target = $region9
    $region8: #{tpu_custom_call.1} parent=1 // pred_region
      _
    $region9: #{tpu_custom_call.1} parent=1 // pred_fallthru
      _
    // Predicated region
    $region10: #{tpu_custom_call.1} parent=1 // pred_check
      _
    $region11: #{tpu_custom_call.1} parent=1 // pred_check_branch
      %14 = sbr.rel (0) target = $region13
    $region12: #{tpu_custom_call.1} parent=1 // pred_region
      _
    $region13: #{tpu_custom_call.1} parent=1 // pred_fallthru
      _
    %v15 = vld [vmem:[%s0] sm:$0xf]
    %v16 = vmul.f32 %v15, %v15
    %v17 = vld [vmem:[%s1] sm:$0xff]
    %v18 = vld [vmem:[%s1 + $0x8] sm:$0xff]
    %v19 = vld [vmem:[%s1 + $0x10] sm:$0xff]
    %v20 = vld [vmem:[%s1 + $0x18] sm:$0xff]
    %v21 = vld [vmem:[%s1 + $0x20] sm:$0xff]
    %v22 = vld [vmem:[%s1 + $0x28] sm:$0xff]
    %v23 = vld [vmem:[%s1 + $0x30] sm:$0xff]
    %v24 = vld [vmem:[%s1 + $0x38] sm:$0xff]
    %v25 = vld [vmem:[%s1 + $0x40] sm:$0xff]
    %v26 = vld [vmem:[%s1 + $0x48] sm:$0xff]
    %v27 = vld [vmem:[%s1 + $0x50] sm:$0xff]
    %v28 = vld [vmem:[%s1 + $0x58] sm:$0xff]
    %v29 = vld [vmem:[%s1 + $0x60] sm:$0xff]
    %v30 = vld [vmem:[%s1 + $0x68] sm:$0xff]
    %v31 = vld [vmem:[%s1 + $0x70] sm:$0xff]
    %v32 = vld [vmem:[%s1 + $0x78] sm:$0xff]
    %33 = vmatprep.subr.mxu0 0.0
    %34 = vmatpush1.msra.mxu0 %v32
    %35 = vmatprep.subr.mxu0 0.0
    %36 = vmatpush1.msra.mxu0 %v31
    %37 = vmatprep.subr.mxu0 0.0
    %38 = vmatpush1.msra.mxu0 %v30
    %39 = vmatprep.subr.mxu0 0.0
    %40 = vmatpush1.msra.mxu0 %v29
    %41 = vmatprep.subr.mxu0 0.0
    %42 = vmatpush1.msra.mxu0 %v28
    %43 = vmatprep.subr.mxu0 0.0
    %44 = vmatpush1.msra.mxu0 %v27
    %45 = vmatprep.subr.mxu0 0.0
    %46 = vmatpush1.msra.mxu0 %v26
    %47 = vmatprep.subr.mxu0 0.0
    %48 = vmatpush1.msra.mxu0 %v25
    %49 = vmatprep.subr.mxu0 0.0
    %50 = vmatpush1.msra.mxu0 %v24
    %51 = vmatprep.subr.mxu0 0.0
    %52 = vmatpush1.msra.mxu0 %v23
    %53 = vmatprep.subr.mxu0 0.0
    %54 = vmatpush1.msra.mxu0 %v22
    %55 = vmatprep.subr.mxu0 0.0
    %56 = vmatpush1.msra.mxu0 %v21
    %57 = vmatprep.subr.mxu0 0.0
    %58 = vmatpush1.msra.mxu0 %v20
    %59 = vmatprep.subr.mxu0 0.0
    %60 = vmatpush1.msra.mxu0 %v19
    %61 = vmatprep.subr.mxu0 0.0
    %62 = vmatpush1.msra.mxu0 %v18
    %63 = vmatprep.subr.mxu0 0.0
    %64 = vmatpush1.msra.mxu0 %v17
    %65 = vmatprep.subr.mxu0 0.0
    %66 = vmatpush2.msra.mxu0 0.0
    %67 = vmatprep.subr.mxu0 0.0
    %68 = vmatpush2.msra.mxu0 0.0
    %69 = vmatprep.subr.mxu0 0.0
    %70 = vmatpush2.msra.mxu0 0.0
    %71 = vmatprep.subr.mxu0 0.0
    %72 = vmatpush2.msra.mxu0 0.0
    %73 = vmatprep.subr.mxu0 0.0
    %74 = vmatpush2.msra.mxu0 0.0
    %75 = vmatprep.subr.mxu0 0.0
    %76 = vmatpush2.msra.mxu0 0.0
    %77 = vmatprep.subr.mxu0 0.0
    %78 = vmatpush2.msra.mxu0 0.0
    %79 = vmatprep.subr.mxu0 0.0
    %80 = vmatpush2.msra.mxu0 0.0
    %81 = vmatprep.subr.mxu0 0.0
    %82 = vmatpush2.msra.mxu0 0.0
    %83 = vmatprep.subr.mxu0 0.0
    %84 = vmatpush2.msra.mxu0 0.0
    %85 = vmatprep.subr.mxu0 0.0
    %86 = vmatpush2.msra.mxu0 0.0
    %87 = vmatprep.subr.mxu0 0.0
    %88 = vmatpush2.msra.mxu0 0.0
    %89 = vmatprep.subr.mxu0 0.0
    %90 = vmatpush2.msra.mxu0 0.0
    %91 = vmatprep.subr.mxu0 0.0
    %92 = vmatpush2.msra.mxu0 0.0
    %93 = vmatprep.subr.mxu0 0.0
    %94 = vmatpush2.msra.mxu0 0.0
    %95 = vmatprep.subr.mxu0 0.0
    %96 = vmatpush2.msra.mxu0 0.0
    %97 = vmatprep.mubr.f32.mxu0 0.0
    %98 = vmatmul.mubr.f32.gmra.mxu0 %v16
    %v99 = vpop.f32.mrf.mxu0
    %v100 = vadd.f32 0.0, %v99
    %v101 = vpop.f32.mrf.mxu0
    %102 = vdwg.mxu0
    %v103 = vmul.f32 %v100, 0.03125
    %v104 = vrsqrt.pop %v103
    %v105 = vld [vmem:[%s2] sm:$0xf]
    %vm106 = vcmask 31744
    %v108 = vsel %vm106, %v104, 0
    %vm110 = vcmask 1043456
    %v112 = vsel %vm110, %v105, 0
    %114 = vmatprep.subr.mxu0 0.0
    %115 = vmatpush1.msra.mxu0 0.0
    %116 = vmatprep.subr.mxu0 0.0
    %117 = vmatpush1.msra.mxu0 0.0
    %118 = vmatprep.subr.mxu0 0.0
    %119 = vmatpush1.msra.mxu0 0.0
    %120 = vmatprep.subr.mxu0 0.0
    %121 = vmatpush1.msra.mxu0 0.0
    %122 = vmatprep.subr.mxu0 0.0
    %123 = vmatpush1.msra.mxu0 0.0
    %124 = vmatprep.subr.mxu0 0.0
    %125 = vmatpush1.msra.mxu0 0.0
    %126 = vmatprep.subr.mxu0 0.0
    %127 = vmatpush1.msra.mxu0 0.0
    %128 = vmatprep.subr.mxu0 0.0
    %129 = vmatpush1.msra.mxu0 0.0
    %130 = vmatprep.subr.mxu0 0.0
    %131 = vmatpush1.msra.mxu0 0.0
    %132 = vmatprep.subr.mxu0 0.0
    %133 = vmatpush1.msra.mxu0 0.0
    %134 = vmatprep.subr.mxu0 0.0
    %135 = vmatpush1.msra.mxu0 0.0
    %136 = vmatprep.subr.mxu0 0.0
    %137 = vmatpush1.msra.mxu0 0.0
    %138 = vmatprep.subr.mxu0 0.0
    %139 = vmatpush1.msra.mxu0 0.0
    %140 = vmatprep.subr.mxu0 0.0
    %141 = vmatpush1.msra.mxu0 0.0
    %142 = vmatprep.subr.mxu0 0.0
    %143 = vmatpush1.msra.mxu0 0.0
    %144 = vmatprep.subr.mxu0 0.0
    %145 = vmatpush1.msra.mxu0 %v112
    %146 = vmatprep.subr.mxu0 0.0
    %147 = vmatpush2.msra.mxu0 0.0
    %148 = vmatprep.subr.mxu0 0.0
    %149 = vmatpush2.msra.mxu0 0.0
    %150 = vmatprep.subr.mxu0 0.0
    %151 = vmatpush2.msra.mxu0 0.0
    %152 = vmatprep.subr.mxu0 0.0
    %153 = vmatpush2.msra.mxu0 0.0
    %154 = vmatprep.subr.mxu0 0.0
    %155 = vmatpush2.msra.mxu0 0.0
    %156 = vmatprep.subr.mxu0 0.0
    %157 = vmatpush2.msra.mxu0 0.0
    %158 = vmatprep.subr.mxu0 0.0
    %159 = vmatpush2.msra.mxu0 0.0
    %160 = vmatprep.subr.mxu0 0.0
    %161 = vmatpush2.msra.mxu0 0.0
    %162 = vmatprep.subr.mxu0 0.0
    %163 = vmatpush2.msra.mxu0 0.0
    %164 = vmatprep.subr.mxu0 0.0
    %165 = vmatpush2.msra.mxu0 0.0
    %166 = vmatprep.subr.mxu0 0.0
    %167 = vmatpush2.msra.mxu0 0.0
    %168 = vmatprep.subr.mxu0 0.0
    %169 = vmatpush2.msra.mxu0 0.0
    %170 = vmatprep.subr.mxu0 0.0
    %171 = vmatpush2.msra.mxu0 0.0
    %172 = vmatprep.subr.mxu0 0.0
    %173 = vmatpush2.msra.mxu0 0.0
    %174 = vmatprep.subr.mxu0 0.0
    %175 = vmatpush2.msra.mxu0 0.0
    %176 = vmatprep.subr.mxu0 0.0
    %177 = vmatpush2.msra.mxu0 0.0
    %178 = vmatprep.mubr.f32.mxu0 0.0
    %179 = vmatmul.mubr.f32.gmra.mxu0 %v108
    %v180 = vpop.f32.mrf.mxu0
    %v181 = vadd.f32 0.0, %v180
    %v182 = vpop.f32.mrf.mxu0
    %183 = vdwg.mxu0
    %v184 = vmul.f32 %v15, %v181
    %185 = vst [vmem:[#allocation2] sm:$0xf] %v184
    // Predicated region
    $region14: #{tpu_custom_call.1} parent=1 // pred_check
      _
    $region15: #{tpu_custom_call.1} parent=1 // pred_check_branch
      %187 = sbr.rel (0) target = $region17
    $region16: #{tpu_custom_call.1} parent=1 // pred_region
      %s189 = ssub.s32 64, 64
      %190 = vsyncadd [#allocation3], %s189
      %s192 = sshll.u32 [#allocation2], 4
      %s193 = int_to_ptr.vmem [resolvable:$true] %s192
      %195 = dma.vmem_to_hbm [thread:$0]  %s193, 64, %s3, [#allocation3]
    $region17: #{tpu_custom_call.1} parent=1 // pred_fallthru
      _
    // Predicated region
    $region18: #{tpu_custom_call.1} parent=1 // pred_check
      _
    $region19: #{tpu_custom_call.1} parent=1 // pred_check_branch
      %197 = sbr.rel (0) target = $region21
    $region20: #{tpu_custom_call.1} parent=1 // pred_region
      %198 = dma.done [#allocation3], 64
    $region21: #{tpu_custom_call.1} parent=1 // pred_fallthru
      _
    %199 = vsyncpa [#allocation3], 1

</llo_original>
